<compile_context>
chip_gen: v7x
topology: tpu7x:2x2x1
jax: 0.10.0
libtpu: 0.0.40
codegen_flags: <defaults>
</compile_context>

<pallas_src>
import functools

import jax
import jax.numpy as jnp
from jax.experimental import pallas as pl
from jax.experimental.pallas import tpu as pltpu


def _likelihood_kernel(states_ref, actions_ref, w1t_ref, b1t_ref, w2t_ref,
                       b2t_ref, out_ref, *, num_valid):
    """One (core, tile) grid step over a lane-dense (feature, sample) tile."""
    i = pl.program_id(1)

    # Per-core lane-dense partial accumulator lives in the revisited output
    # block; zero it at this core's first tile.
    @pl.when(i == 0)
    def _():
        out_ref[...] = jnp.zeros_like(out_ref)

    s = states_ref[...]            # (D, TILE_L) f32, samples on the lane axis
    a = actions_ref[...]           # (1, TILE_L) int32
    w1t = w1t_ref[...]             # (H, D) f32
    b1t = b1t_ref[...]             # (H, 1) f32
    w2t = w2t_ref[...]             # (N, H) f32, pre-scaled by temperature b
    b2t = b2t_ref[...]             # (N, 1) f32, pre-scaled by temperature b

    d_in = s.shape[0]
    hidden = w1t.shape[0]
    tile_l = s.shape[1]

    # --- Q_vector: 2-layer MLP as VPU broadcast-MACs (MXU skipped: contraction
    # dims of 4 / 32 would use <2% of the systolic array and need bf16 packing;
    # this keeps the whole forward in exact f32).
    h = b1t + w1t[:, 0:1] * s[0:1, :]                      # (H, TILE_L)
    for d in range(1, d_in):
        h = h + w1t[:, d:d + 1] * s[d:d + 1, :]
    h = jnp.maximum(h, 0.0)

    logits = b2t + w2t[:, 0:1] * h[0:1, :]                 # (N, TILE_L) == b*Q_vector
    for j in range(1, hidden):
        logits = logits + w2t[:, j:j + 1] * h[j:j + 1, :]

    # --- log(sum_a exp(b*Q)): numerically stable logsumexp over the action
    # (sublane) axis -- an exact 8-sublane reduce in this layout.
    m = jnp.max(logits, axis=0, keepdims=True)                          # (1, TILE_L)
    lse = m + jnp.log(jnp.sum(jnp.exp(logits - m), axis=0, keepdims=True))

    # --- b * Q(s_i, a_i) == logits[a_i, i] via one-hot sublane select.
    row = jax.lax.broadcasted_iota(jnp.int32, logits.shape, 0)
    chosen = jnp.sum(jnp.where(row == a, logits, 0.0), axis=0, keepdims=True)

    # --- mask lanes past L (ragged last tile / clamped duplicate tile).  Garbage
    # from the padded HBM read stays confined to its own (masked) lane.
    t = pl.program_id(0) * pl.num_programs(1) + i          # logical tile index
    col = t * tile_l + jax.lax.broadcasted_iota(jnp.int32, (1, tile_l), 1)
    contrib = jnp.where(col < num_valid, lse - chosen, 0.0)

    # Lane-dense vector accumulate; the single cross-lane reduce + 1/L scale
    # happen once, in the wrapper, on (num_cores * TILE_L) elements.
    out_ref[...] += contrib.reshape(out_ref.shape)


def likelihood_loss(states, actions, w1, b1, w2, b2, b, *,
                    max_tile_l=8192, num_cores=2):
    L, D = states.shape
    H = w1.shape[1]
    N = w2.shape[1]

    # Tile the sample axis: either one full-array tile or lane-aligned 8192-wide
    # tiles.  Per-step VMEM footprint at tile_l=8192 is ~3 MiB (h + logits +
    # double-buffered inputs) -- far under default scoped VMEM on v5e/v6e/v7x.
    tile_l = max_tile_l if L > max_tile_l else L
    num_tiles = pl.cdiv(L, tile_l)
    tiles_per_core = pl.cdiv(num_tiles, num_cores)
    last_tile = num_tiles - 1
    grid = (num_cores, tiles_per_core)

    # Lane-dense layout: the sample axis lands on the 128-lane axis.
    # TODO(synk): the (L, D) -> (D, L) transpose is one extra XLA pass over the
    # states; store/collect states as (D, L) upstream to remove it entirely.
    states_t = jnp.asarray(states, jnp.float32).T          # (D, L)
    actions_row = jnp.asarray(actions, jnp.int32).reshape(1, L)

    # Fold temperature b into the second layer (one-time scale of a tiny weight)
    # and pre-transpose params to the (out_features, in_features) orientation
    # the kernel consumes.
    w1t = jnp.asarray(w1, jnp.float32).T                   # (H, D)
    b1t = jnp.asarray(b1, jnp.float32).reshape(H, 1)       # (H, 1)
    w2t = (float(b) * jnp.asarray(w2, jnp.float32)).T      # (N, H)
    b2t = (float(b) * jnp.asarray(b2, jnp.float32)).reshape(N, 1)

    def stream_map(c, i):
        # Clamp so an odd tile count never yields an out-of-range block index;
        # the duplicated tile is fully masked inside the kernel.
        return (0, jnp.minimum(c * tiles_per_core + i, last_tile))

    kernel = functools.partial(_likelihood_kernel, num_valid=L)

    partials = pl.pallas_call(
        kernel,
        out_shape=jax.ShapeDtypeStruct((num_cores, 1, tile_l), jnp.float32),
        grid_spec=pltpu.PrefetchScalarGridSpec(
            num_scalar_prefetch=0,
            grid=grid,
            in_specs=[
                pl.BlockSpec((D, tile_l), stream_map),       # states: streamed
                pl.BlockSpec((1, tile_l), stream_map),       # actions: streamed
                pl.BlockSpec((H, D), lambda c, i: (0, 0)),   # params: VMEM-resident
                pl.BlockSpec((H, 1), lambda c, i: (0, 0)),
                pl.BlockSpec((N, H), lambda c, i: (0, 0)),
                pl.BlockSpec((N, 1), lambda c, i: (0, 0)),
            ],
            out_specs=pl.BlockSpec((1, 1, tile_l), lambda c, i: (c, 0, 0)),
        ),
        compiler_params=pltpu.CompilerParams(
            # Leading axis splits the sample range across TensorCores (2 on
            # v7x; serialized and nearly free on single-TC v5e/v6e); the inner
            # reduction axis stays sequential per core.
            dimension_semantics=("parallel", "arbitrary"),
        ),
    )(states_t, actions_row, w1t, b1t, w2t, b2t)

    # Single cross-lane reduce + precomputed 1/L scale on a tiny array.
    return jnp.sum(partials) * (1.0 / float(L))


def _reference(states, actions, w1, b1, w2, b2, b):
    # Full-f32 reference (HIGHEST matmul precision so MXU bf16 passes do not
    # pollute the comparison; the kernel is exact f32 throughout).
    hp = jax.lax.Precision.HIGHEST
    h = jnp.maximum(jnp.dot(states, w1, precision=hp) + b1, 0.0)
    q = jnp.dot(h, w2, precision=hp) + b2
    logits = b * q
    lse = jax.scipy.special.logsumexp(logits, axis=-1)
    chosen = jnp.take_along_axis(logits, actions[:, None].astype(jnp.int32),
                                 axis=-1)[:, 0]
    return jnp.mean(lse - chosen)


if __name__ == "__main__":
    # Small shapes consistent with the module: L=8 (state, action) pairs,
    # state_dim=4, hidden=32, N=8 actions, temperature b=0.5.
    L, D, H, N = 8, 4, 32, 8
    b = 0.5

    key = jax.random.PRNGKey(0)
    k_s, k_a, k_w1, k_b1, k_w2, k_b2 = jax.random.split(key, 6)

    states = jax.random.normal(k_s, (L, D), dtype=jnp.float32)
    actions = jax.random.randint(k_a, (L,), 0, N, dtype=jnp.int32)

    # Deterministic synthetic Q-network parameters (the PyTorch `net` is
    # unspecified; realized here as a 2-layer MLP Q_vector(s)=relu(sW1+b1)W2+b2).
    w1 = 0.1 * jax.random.normal(k_w1, (D, H), dtype=jnp.float32)
    b1 = 0.01 * jax.random.normal(k_b1, (1, H), dtype=jnp.float32)
    w2 = 0.1 * jax.random.normal(k_w2, (H, N), dtype=jnp.float32)
    b2 = 0.01 * jax.random.normal(k_b2, (1, N), dtype=jnp.float32)

    loss = likelihood_loss(states, actions, w1, b1, w2, b2, b)
    jax.block_until_ready(loss)
    ref = _reference(states, actions, w1, b1, w2, b2, b)
    assert jnp.allclose(loss, ref, atol=1e-4, rtol=1e-4), (loss, ref)

    # Larger batch exercising multi-tile streaming, the ragged (masked) last
    # tile, and the odd-tile-count clamp on the 2-way TensorCore split.
    L2 = 20000
    k_s2, k_a2 = jax.random.split(jax.random.PRNGKey(1), 2)
    states2 = jax.random.normal(k_s2, (L2, D), dtype=jnp.float32)
    actions2 = jax.random.randint(k_a2, (L2,), 0, N, dtype=jnp.int32)
    loss2 = likelihood_loss(states2, actions2, w1, b1, w2, b2, b)
    jax.block_until_ready(loss2)
    ref2 = _reference(states2, actions2, w1, b1, w2, b2, b)
    assert jnp.allclose(loss2, ref2, atol=1e-4, rtol=1e-4), (loss2, ref2)

    # TODO(synk): the `states[i][0] == 8.0 and states[i][1] == 6.0 and False`
    # eval branch (and `net.readout` toggling) in the original forward is dead
    # code (always False) and is intentionally omitted.
    print("KERNEL_OK")
</pallas_src>

<mosaic_0001>
module attributes {stable_mosaic.version = 11 : i64} {
  func.func @_likelihood_kernel(%arg0: i32, %arg1: i32, %arg2: memref<4x8xf32, #tpu.memory_space<vmem>>, %arg3: memref<1x8xi32, #tpu.memory_space<vmem>>, %arg4: memref<32x4xf32, #tpu.memory_space<vmem>>, %arg5: memref<32x1xf32, #tpu.memory_space<vmem>>, %arg6: memref<8x32xf32, #tpu.memory_space<vmem>>, %arg7: memref<8x1xf32, #tpu.memory_space<vmem>>, %arg8: memref<1x1x8xf32, #tpu.memory_space<vmem>>) attributes {dimension_semantics = [#tpu.dimension_semantics<parallel>, #tpu.dimension_semantics<arbitrary>], iteration_bounds = array<i64: 2, 1>, scalar_prefetch = 0 : i64, scratch_operands = 0 : i64, tpu.core_type = #tpu.core_type<tc>, window_params = [{transform_indices = @transform_0, window_bounds = array<i64: 4, 8>}, {transform_indices = @transform_1, window_bounds = array<i64: 1, 8>}, {pipeline_mode = #tpu.pipeline_mode<synchronous>, transform_indices = @transform_2, window_bounds = array<i64: 32, 4>}, {pipeline_mode = #tpu.pipeline_mode<synchronous>, transform_indices = @transform_3, window_bounds = array<i64: 32, 1>}, {pipeline_mode = #tpu.pipeline_mode<synchronous>, transform_indices = @transform_4, window_bounds = array<i64: 8, 32>}, {pipeline_mode = #tpu.pipeline_mode<synchronous>, transform_indices = @transform_5, window_bounds = array<i64: 8, 1>}, {transform_indices = @transform_6, window_bounds = array<i64: 1, 1, 8>}]} {
    %c0_i32 = arith.constant 0 : i32
    %0 = arith.cmpi eq, %arg1, %c0_i32 : i32
    %1 = arith.extui %0 : i1 to i32
    %c0_i32_0 = arith.constant 0 : i32
    %2 = arith.cmpi ne, %1, %c0_i32_0 : i32
    scf.if %2 {
      %cst_24 = arith.constant 0.000000e+00 : f32
      %260 = vector.broadcast %cst_24 : f32 to vector<1x1x8xf32>
      %c0_25 = arith.constant 0 : index
      %c0_26 = arith.constant 0 : index
      %c0_27 = arith.constant 0 : index
      %261 = vector.load %arg8[%c0_25, %c0_26, %c0_27] : memref<1x1x8xf32, #tpu.memory_space<vmem>>, vector<1x1x8xf32>
      tpu.vector_store %arg8[%c0_25, %c0_26, %c0_27], %260 {strides = array<i32>} : memref<1x1x8xf32, #tpu.memory_space<vmem>>, vector<1x1x8xf32>,
    } else {
    }
    %c0 = arith.constant 0 : index
    %c0_1 = arith.constant 0 : index
    %3 = vector.load %arg2[%c0, %c0_1] : memref<4x8xf32, #tpu.memory_space<vmem>>, vector<4x8xf32>
    %c0_2 = arith.constant 0 : index
    %c0_3 = arith.constant 0 : index
    %4 = vector.load %arg3[%c0_2, %c0_3] : memref<1x8xi32, #tpu.memory_space<vmem>>, vector<1x8xi32>
    %c0_4 = arith.constant 0 : index
    %c0_5 = arith.constant 0 : index
    %5 = vector.load %arg4[%c0_4, %c0_5] : memref<32x4xf32, #tpu.memory_space<vmem>>, vector<32x4xf32>
    %c0_6 = arith.constant 0 : index
    %c0_7 = arith.constant 0 : index
    %6 = vector.load %arg5[%c0_6, %c0_7] : memref<32x1xf32, #tpu.memory_space<vmem>>, vector<32x1xf32>
    %c0_8 = arith.constant 0 : index
    %c0_9 = arith.constant 0 : index
    %7 = vector.load %arg6[%c0_8, %c0_9] : memref<8x32xf32, #tpu.memory_space<vmem>>, vector<8x32xf32>
    %c0_10 = arith.constant 0 : index
    %c0_11 = arith.constant 0 : index
    %8 = vector.load %arg7[%c0_10, %c0_11] : memref<8x1xf32, #tpu.memory_space<vmem>>, vector<8x1xf32>
    %9 = vector.extract_strided_slice %5 {offsets = [0, 0], sizes = [32, 1], strides = [1, 1]} : vector<32x4xf32> to vector<32x1xf32>
    %10 = vector.extract_strided_slice %3 {offsets = [0, 0], sizes = [1, 8], strides = [1, 1]} : vector<4x8xf32> to vector<1x8xf32>
    %11 = vector.broadcast %9 : vector<32x1xf32> to vector<32x8xf32>
    %12 = vector.broadcast %10 : vector<1x8xf32> to vector<32x8xf32>
    %13 = arith.mulf %11, %12 : vector<32x8xf32>
    %14 = vector.broadcast %6 : vector<32x1xf32> to vector<32x8xf32>
    %15 = arith.addf %14, %13 : vector<32x8xf32>
    %16 = vector.extract_strided_slice %5 {offsets = [0, 1], sizes = [32, 1], strides = [1, 1]} : vector<32x4xf32> to vector<32x1xf32>
    %17 = vector.extract_strided_slice %3 {offsets = [1, 0], sizes = [1, 8], strides = [1, 1]} : vector<4x8xf32> to vector<1x8xf32>
    %18 = vector.broadcast %16 : vector<32x1xf32> to vector<32x8xf32>
    %19 = vector.broadcast %17 : vector<1x8xf32> to vector<32x8xf32>
    %20 = arith.mulf %18, %19 : vector<32x8xf32>
    %21 = arith.addf %15, %20 : vector<32x8xf32>
    %22 = vector.extract_strided_slice %5 {offsets = [0, 2], sizes = [32, 1], strides = [1, 1]} : vector<32x4xf32> to vector<32x1xf32>
    %23 = vector.extract_strided_slice %3 {offsets = [2, 0], sizes = [1, 8], strides = [1, 1]} : vector<4x8xf32> to vector<1x8xf32>
    %24 = vector.broadcast %22 : vector<32x1xf32> to vector<32x8xf32>
    %25 = vector.broadcast %23 : vector<1x8xf32> to vector<32x8xf32>
    %26 = arith.mulf %24, %25 : vector<32x8xf32>
    %27 = arith.addf %21, %26 : vector<32x8xf32>
    %28 = vector.extract_strided_slice %5 {offsets = [0, 3], sizes = [32, 1], strides = [1, 1]} : vector<32x4xf32> to vector<32x1xf32>
    %29 = vector.extract_strided_slice %3 {offsets = [3, 0], sizes = [1, 8], strides = [1, 1]} : vector<4x8xf32> to vector<1x8xf32>
    %30 = vector.broadcast %28 : vector<32x1xf32> to vector<32x8xf32>
    %31 = vector.broadcast %29 : vector<1x8xf32> to vector<32x8xf32>
    %32 = arith.mulf %30, %31 : vector<32x8xf32>
    %33 = arith.addf %27, %32 : vector<32x8xf32>
    %cst = arith.constant 0.000000e+00 : f32
    %34 = vector.broadcast %cst : f32 to vector<32x8xf32>
    %35 = arith.maximumf %33, %34 : vector<32x8xf32>
    %36 = vector.extract_strided_slice %7 {offsets = [0, 0], sizes = [8, 1], strides = [1, 1]} : vector<8x32xf32> to vector<8x1xf32>
    %37 = vector.extract_strided_slice %35 {offsets = [0, 0], sizes = [1, 8], strides = [1, 1]} : vector<32x8xf32> to vector<1x8xf32>
    %38 = vector.broadcast %36 : vector<8x1xf32> to vector<8x8xf32>
    %39 = vector.broadcast %37 : vector<1x8xf32> to vector<8x8xf32>
    %40 = arith.mulf %38, %39 : vector<8x8xf32>
    %41 = vector.broadcast %8 : vector<8x1xf32> to vector<8x8xf32>
    %42 = arith.addf %41, %40 : vector<8x8xf32>
    %43 = vector.extract_strided_slice %7 {offsets = [0, 1], sizes = [8, 1], strides = [1, 1]} : vector<8x32xf32> to vector<8x1xf32>
    %44 = vector.extract_strided_slice %35 {offsets = [1, 0], sizes = [1, 8], strides = [1, 1]} : vector<32x8xf32> to vector<1x8xf32>
    %45 = vector.broadcast %43 : vector<8x1xf32> to vector<8x8xf32>
    %46 = vector.broadcast %44 : vector<1x8xf32> to vector<8x8xf32>
    %47 = arith.mulf %45, %46 : vector<8x8xf32>
    %48 = arith.addf %42, %47 : vector<8x8xf32>
    %49 = vector.extract_strided_slice %7 {offsets = [0, 2], sizes = [8, 1], strides = [1, 1]} : vector<8x32xf32> to vector<8x1xf32>
    %50 = vector.extract_strided_slice %35 {offsets = [2, 0], sizes = [1, 8], strides = [1, 1]} : vector<32x8xf32> to vector<1x8xf32>
    %51 = vector.broadcast %49 : vector<8x1xf32> to vector<8x8xf32>
    %52 = vector.broadcast %50 : vector<1x8xf32> to vector<8x8xf32>
    %53 = arith.mulf %51, %52 : vector<8x8xf32>
    %54 = arith.addf %48, %53 : vector<8x8xf32>
    %55 = vector.extract_strided_slice %7 {offsets = [0, 3], sizes = [8, 1], strides = [1, 1]} : vector<8x32xf32> to vector<8x1xf32>
    %56 = vector.extract_strided_slice %35 {offsets = [3, 0], sizes = [1, 8], strides = [1, 1]} : vector<32x8xf32> to vector<1x8xf32>
    %57 = vector.broadcast %55 : vector<8x1xf32> to vector<8x8xf32>
    %58 = vector.broadcast %56 : vector<1x8xf32> to vector<8x8xf32>
    %59 = arith.mulf %57, %58 : vector<8x8xf32>
    %60 = arith.addf %54, %59 : vector<8x8xf32>
    %61 = vector.extract_strided_slice %7 {offsets = [0, 4], sizes = [8, 1], strides = [1, 1]} : vector<8x32xf32> to vector<8x1xf32>
    %62 = vector.extract_strided_slice %35 {offsets = [4, 0], sizes = [1, 8], strides = [1, 1]} : vector<32x8xf32> to vector<1x8xf32>
    %63 = vector.broadcast %61 : vector<8x1xf32> to vector<8x8xf32>
    %64 = vector.broadcast %62 : vector<1x8xf32> to vector<8x8xf32>
    %65 = arith.mulf %63, %64 : vector<8x8xf32>
    %66 = arith.addf %60, %65 : vector<8x8xf32>
    %67 = vector.extract_strided_slice %7 {offsets = [0, 5], sizes = [8, 1], strides = [1, 1]} : vector<8x32xf32> to vector<8x1xf32>
    %68 = vector.extract_strided_slice %35 {offsets = [5, 0], sizes = [1, 8], strides = [1, 1]} : vector<32x8xf32> to vector<1x8xf32>
    %69 = vector.broadcast %67 : vector<8x1xf32> to vector<8x8xf32>
    %70 = vector.broadcast %68 : vector<1x8xf32> to vector<8x8xf32>
    %71 = arith.mulf %69, %70 : vector<8x8xf32>
    %72 = arith.addf %66, %71 : vector<8x8xf32>
    %73 = vector.extract_strided_slice %7 {offsets = [0, 6], sizes = [8, 1], strides = [1, 1]} : vector<8x32xf32> to vector<8x1xf32>
    %74 = vector.extract_strided_slice %35 {offsets = [6, 0], sizes = [1, 8], strides = [1, 1]} : vector<32x8xf32> to vector<1x8xf32>
    %75 = vector.broadcast %73 : vector<8x1xf32> to vector<8x8xf32>
    %76 = vector.broadcast %74 : vector<1x8xf32> to vector<8x8xf32>
    %77 = arith.mulf %75, %76 : vector<8x8xf32>
    %78 = arith.addf %72, %77 : vector<8x8xf32>
    %79 = vector.extract_strided_slice %7 {offsets = [0, 7], sizes = [8, 1], strides = [1, 1]} : vector<8x32xf32> to vector<8x1xf32>
    %80 = vector.extract_strided_slice %35 {offsets = [7, 0], sizes = [1, 8], strides = [1, 1]} : vector<32x8xf32> to vector<1x8xf32>
    %81 = vector.broadcast %79 : vector<8x1xf32> to vector<8x8xf32>
    %82 = vector.broadcast %80 : vector<1x8xf32> to vector<8x8xf32>
    %83 = arith.mulf %81, %82 : vector<8x8xf32>
    %84 = arith.addf %78, %83 : vector<8x8xf32>
    %85 = vector.extract_strided_slice %7 {offsets = [0, 8], sizes = [8, 1], strides = [1, 1]} : vector<8x32xf32> to vector<8x1xf32>
    %86 = vector.extract_strided_slice %35 {offsets = [8, 0], sizes = [1, 8], strides = [1, 1]} : vector<32x8xf32> to vector<1x8xf32>
    %87 = vector.broadcast %85 : vector<8x1xf32> to vector<8x8xf32>
    %88 = vector.broadcast %86 : vector<1x8xf32> to vector<8x8xf32>
    %89 = arith.mulf %87, %88 : vector<8x8xf32>
    %90 = arith.addf %84, %89 : vector<8x8xf32>
    %91 = vector.extract_strided_slice %7 {offsets = [0, 9], sizes = [8, 1], strides = [1, 1]} : vector<8x32xf32> to vector<8x1xf32>
    %92 = vector.extract_strided_slice %35 {offsets = [9, 0], sizes = [1, 8], strides = [1, 1]} : vector<32x8xf32> to vector<1x8xf32>
    %93 = vector.broadcast %91 : vector<8x1xf32> to vector<8x8xf32>
    %94 = vector.broadcast %92 : vector<1x8xf32> to vector<8x8xf32>
    %95 = arith.mulf %93, %94 : vector<8x8xf32>
    %96 = arith.addf %90, %95 : vector<8x8xf32>
    %97 = vector.extract_strided_slice %7 {offsets = [0, 10], sizes = [8, 1], strides = [1, 1]} : vector<8x32xf32> to vector<8x1xf32>
    %98 = vector.extract_strided_slice %35 {offsets = [10, 0], sizes = [1, 8], strides = [1, 1]} : vector<32x8xf32> to vector<1x8xf32>
    %99 = vector.broadcast %97 : vector<8x1xf32> to vector<8x8xf32>
    %100 = vector.broadcast %98 : vector<1x8xf32> to vector<8x8xf32>
    %101 = arith.mulf %99, %100 : vector<8x8xf32>
    %102 = arith.addf %96, %101 : vector<8x8xf32>
    %103 = vector.extract_strided_slice %7 {offsets = [0, 11], sizes = [8, 1], strides = [1, 1]} : vector<8x32xf32> to vector<8x1xf32>
    %104 = vector.extract_strided_slice %35 {offsets = [11, 0], sizes = [1, 8], strides = [1, 1]} : vector<32x8xf32> to vector<1x8xf32>
    %105 = vector.broadcast %103 : vector<8x1xf32> to vector<8x8xf32>
    %106 = vector.broadcast %104 : vector<1x8xf32> to vector<8x8xf32>
    %107 = arith.mulf %105, %106 : vector<8x8xf32>
    %108 = arith.addf %102, %107 : vector<8x8xf32>
    %109 = vector.extract_strided_slice %7 {offsets = [0, 12], sizes = [8, 1], strides = [1, 1]} : vector<8x32xf32> to vector<8x1xf32>
    %110 = vector.extract_strided_slice %35 {offsets = [12, 0], sizes = [1, 8], strides = [1, 1]} : vector<32x8xf32> to vector<1x8xf32>
    %111 = vector.broadcast %109 : vector<8x1xf32> to vector<8x8xf32>
    %112 = vector.broadcast %110 : vector<1x8xf32> to vector<8x8xf32>
    %113 = arith.mulf %111, %112 : vector<8x8xf32>
    %114 = arith.addf %108, %113 : vector<8x8xf32>
    %115 = vector.extract_strided_slice %7 {offsets = [0, 13], sizes = [8, 1], strides = [1, 1]} : vector<8x32xf32> to vector<8x1xf32>
    %116 = vector.extract_strided_slice %35 {offsets = [13, 0], sizes = [1, 8], strides = [1, 1]} : vector<32x8xf32> to vector<1x8xf32>
    %117 = vector.broadcast %115 : vector<8x1xf32> to vector<8x8xf32>
    %118 = vector.broadcast %116 : vector<1x8xf32> to vector<8x8xf32>
    %119 = arith.mulf %117, %118 : vector<8x8xf32>
    %120 = arith.addf %114, %119 : vector<8x8xf32>
    %121 = vector.extract_strided_slice %7 {offsets = [0, 14], sizes = [8, 1], strides = [1, 1]} : vector<8x32xf32> to vector<8x1xf32>
    %122 = vector.extract_strided_slice %35 {offsets = [14, 0], sizes = [1, 8], strides = [1, 1]} : vector<32x8xf32> to vector<1x8xf32>
    %123 = vector.broadcast %121 : vector<8x1xf32> to vector<8x8xf32>
    %124 = vector.broadcast %122 : vector<1x8xf32> to vector<8x8xf32>
    %125 = arith.mulf %123, %124 : vector<8x8xf32>
    %126 = arith.addf %120, %125 : vector<8x8xf32>
    %127 = vector.extract_strided_slice %7 {offsets = [0, 15], sizes = [8, 1], strides = [1, 1]} : vector<8x32xf32> to vector<8x1xf32>
    %128 = vector.extract_strided_slice %35 {offsets = [15, 0], sizes = [1, 8], strides = [1, 1]} : vector<32x8xf32> to vector<1x8xf32>
    %129 = vector.broadcast %127 : vector<8x1xf32> to vector<8x8xf32>
    %130 = vector.broadcast %128 : vector<1x8xf32> to vector<8x8xf32>
    %131 = arith.mulf %129, %130 : vector<8x8xf32>
    %132 = arith.addf %126, %131 : vector<8x8xf32>
    %133 = vector.extract_strided_slice %7 {offsets = [0, 16], sizes = [8, 1], strides = [1, 1]} : vector<8x32xf32> to vector<8x1xf32>
    %134 = vector.extract_strided_slice %35 {offsets = [16, 0], sizes = [1, 8], strides = [1, 1]} : vector<32x8xf32> to vector<1x8xf32>
    %135 = vector.broadcast %133 : vector<8x1xf32> to vector<8x8xf32>
    %136 = vector.broadcast %134 : vector<1x8xf32> to vector<8x8xf32>
    %137 = arith.mulf %135, %136 : vector<8x8xf32>
    %138 = arith.addf %132, %137 : vector<8x8xf32>
    %139 = vector.extract_strided_slice %7 {offsets = [0, 17], sizes = [8, 1], strides = [1, 1]} : vector<8x32xf32> to vector<8x1xf32>
    %140 = vector.extract_strided_slice %35 {offsets = [17, 0], sizes = [1, 8], strides = [1, 1]} : vector<32x8xf32> to vector<1x8xf32>
    %141 = vector.broadcast %139 : vector<8x1xf32> to vector<8x8xf32>
    %142 = vector.broadcast %140 : vector<1x8xf32> to vector<8x8xf32>
    %143 = arith.mulf %141, %142 : vector<8x8xf32>
    %144 = arith.addf %138, %143 : vector<8x8xf32>
    %145 = vector.extract_strided_slice %7 {offsets = [0, 18], sizes = [8, 1], strides = [1, 1]} : vector<8x32xf32> to vector<8x1xf32>
    %146 = vector.extract_strided_slice %35 {offsets = [18, 0], sizes = [1, 8], strides = [1, 1]} : vector<32x8xf32> to vector<1x8xf32>
    %147 = vector.broadcast %145 : vector<8x1xf32> to vector<8x8xf32>
    %148 = vector.broadcast %146 : vector<1x8xf32> to vector<8x8xf32>
    %149 = arith.mulf %147, %148 : vector<8x8xf32>
    %150 = arith.addf %144, %149 : vector<8x8xf32>
    %151 = vector.extract_strided_slice %7 {offsets = [0, 19], sizes = [8, 1], strides = [1, 1]} : vector<8x32xf32> to vector<8x1xf32>
    %152 = vector.extract_strided_slice %35 {offsets = [19, 0], sizes = [1, 8], strides = [1, 1]} : vector<32x8xf32> to vector<1x8xf32>
    %153 = vector.broadcast %151 : vector<8x1xf32> to vector<8x8xf32>
    %154 = vector.broadcast %152 : vector<1x8xf32> to vector<8x8xf32>
    %155 = arith.mulf %153, %154 : vector<8x8xf32>
    %156 = arith.addf %150, %155 : vector<8x8xf32>
    %157 = vector.extract_strided_slice %7 {offsets = [0, 20], sizes = [8, 1], strides = [1, 1]} : vector<8x32xf32> to vector<8x1xf32>
    %158 = vector.extract_strided_slice %35 {offsets = [20, 0], sizes = [1, 8], strides = [1, 1]} : vector<32x8xf32> to vector<1x8xf32>
    %159 = vector.broadcast %157 : vector<8x1xf32> to vector<8x8xf32>
    %160 = vector.broadcast %158 : vector<1x8xf32> to vector<8x8xf32>
    %161 = arith.mulf %159, %160 : vector<8x8xf32>
    %162 = arith.addf %156, %161 : vector<8x8xf32>
    %163 = vector.extract_strided_slice %7 {offsets = [0, 21], sizes = [8, 1], strides = [1, 1]} : vector<8x32xf32> to vector<8x1xf32>
    %164 = vector.extract_strided_slice %35 {offsets = [21, 0], sizes = [1, 8], strides = [1, 1]} : vector<32x8xf32> to vector<1x8xf32>
    %165 = vector.broadcast %163 : vector<8x1xf32> to vector<8x8xf32>
    %166 = vector.broadcast %164 : vector<1x8xf32> to vector<8x8xf32>
    %167 = arith.mulf %165, %166 : vector<8x8xf32>
    %168 = arith.addf %162, %167 : vector<8x8xf32>
    %169 = vector.extract_strided_slice %7 {offsets = [0, 22], sizes = [8, 1], strides = [1, 1]} : vector<8x32xf32> to vector<8x1xf32>
    %170 = vector.extract_strided_slice %35 {offsets = [22, 0], sizes = [1, 8], strides = [1, 1]} : vector<32x8xf32> to vector<1x8xf32>
    %171 = vector.broadcast %169 : vector<8x1xf32> to vector<8x8xf32>
    %172 = vector.broadcast %170 : vector<1x8xf32> to vector<8x8xf32>
    %173 = arith.mulf %171, %172 : vector<8x8xf32>
    %174 = arith.addf %168, %173 : vector<8x8xf32>
    %175 = vector.extract_strided_slice %7 {offsets = [0, 23], sizes = [8, 1], strides = [1, 1]} : vector<8x32xf32> to vector<8x1xf32>
    %176 = vector.extract_strided_slice %35 {offsets = [23, 0], sizes = [1, 8], strides = [1, 1]} : vector<32x8xf32> to vector<1x8xf32>
    %177 = vector.broadcast %175 : vector<8x1xf32> to vector<8x8xf32>
    %178 = vector.broadcast %176 : vector<1x8xf32> to vector<8x8xf32>
    %179 = arith.mulf %177, %178 : vector<8x8xf32>
    %180 = arith.addf %174, %179 : vector<8x8xf32>
    %181 = vector.extract_strided_slice %7 {offsets = [0, 24], sizes = [8, 1], strides = [1, 1]} : vector<8x32xf32> to vector<8x1xf32>
    %182 = vector.extract_strided_slice %35 {offsets = [24, 0], sizes = [1, 8], strides = [1, 1]} : vector<32x8xf32> to vector<1x8xf32>
    %183 = vector.broadcast %181 : vector<8x1xf32> to vector<8x8xf32>
    %184 = vector.broadcast %182 : vector<1x8xf32> to vector<8x8xf32>
    %185 = arith.mulf %183, %184 : vector<8x8xf32>
    %186 = arith.addf %180, %185 : vector<8x8xf32>
    %187 = vector.extract_strided_slice %7 {offsets = [0, 25], sizes = [8, 1], strides = [1, 1]} : vector<8x32xf32> to vector<8x1xf32>
    %188 = vector.extract_strided_slice %35 {offsets = [25, 0], sizes = [1, 8], strides = [1, 1]} : vector<32x8xf32> to vector<1x8xf32>
    %189 = vector.broadcast %187 : vector<8x1xf32> to vector<8x8xf32>
    %190 = vector.broadcast %188 : vector<1x8xf32> to vector<8x8xf32>
    %191 = arith.mulf %189, %190 : vector<8x8xf32>
    %192 = arith.addf %186, %191 : vector<8x8xf32>
    %193 = vector.extract_strided_slice %7 {offsets = [0, 26], sizes = [8, 1], strides = [1, 1]} : vector<8x32xf32> to vector<8x1xf32>
    %194 = vector.extract_strided_slice %35 {offsets = [26, 0], sizes = [1, 8], strides = [1, 1]} : vector<32x8xf32> to vector<1x8xf32>
    %195 = vector.broadcast %193 : vector<8x1xf32> to vector<8x8xf32>
    %196 = vector.broadcast %194 : vector<1x8xf32> to vector<8x8xf32>
    %197 = arith.mulf %195, %196 : vector<8x8xf32>
    %198 = arith.addf %192, %197 : vector<8x8xf32>
    %199 = vector.extract_strided_slice %7 {offsets = [0, 27], sizes = [8, 1], strides = [1, 1]} : vector<8x32xf32> to vector<8x1xf32>
    %200 = vector.extract_strided_slice %35 {offsets = [27, 0], sizes = [1, 8], strides = [1, 1]} : vector<32x8xf32> to vector<1x8xf32>
    %201 = vector.broadcast %199 : vector<8x1xf32> to vector<8x8xf32>
    %202 = vector.broadcast %200 : vector<1x8xf32> to vector<8x8xf32>
    %203 = arith.mulf %201, %202 : vector<8x8xf32>
    %204 = arith.addf %198, %203 : vector<8x8xf32>
    %205 = vector.extract_strided_slice %7 {offsets = [0, 28], sizes = [8, 1], strides = [1, 1]} : vector<8x32xf32> to vector<8x1xf32>
    %206 = vector.extract_strided_slice %35 {offsets = [28, 0], sizes = [1, 8], strides = [1, 1]} : vector<32x8xf32> to vector<1x8xf32>
    %207 = vector.broadcast %205 : vector<8x1xf32> to vector<8x8xf32>
    %208 = vector.broadcast %206 : vector<1x8xf32> to vector<8x8xf32>
    %209 = arith.mulf %207, %208 : vector<8x8xf32>
    %210 = arith.addf %204, %209 : vector<8x8xf32>
    %211 = vector.extract_strided_slice %7 {offsets = [0, 29], sizes = [8, 1], strides = [1, 1]} : vector<8x32xf32> to vector<8x1xf32>
    %212 = vector.extract_strided_slice %35 {offsets = [29, 0], sizes = [1, 8], strides = [1, 1]} : vector<32x8xf32> to vector<1x8xf32>
    %213 = vector.broadcast %211 : vector<8x1xf32> to vector<8x8xf32>
    %214 = vector.broadcast %212 : vector<1x8xf32> to vector<8x8xf32>
    %215 = arith.mulf %213, %214 : vector<8x8xf32>
    %216 = arith.addf %210, %215 : vector<8x8xf32>
    %217 = vector.extract_strided_slice %7 {offsets = [0, 30], sizes = [8, 1], strides = [1, 1]} : vector<8x32xf32> to vector<8x1xf32>
    %218 = vector.extract_strided_slice %35 {offsets = [30, 0], sizes = [1, 8], strides = [1, 1]} : vector<32x8xf32> to vector<1x8xf32>
    %219 = vector.broadcast %217 : vector<8x1xf32> to vector<8x8xf32>
    %220 = vector.broadcast %218 : vector<1x8xf32> to vector<8x8xf32>
    %221 = arith.mulf %219, %220 : vector<8x8xf32>
    %222 = arith.addf %216, %221 : vector<8x8xf32>
    %223 = vector.extract_strided_slice %7 {offsets = [0, 31], sizes = [8, 1], strides = [1, 1]} : vector<8x32xf32> to vector<8x1xf32>
    %224 = vector.extract_strided_slice %35 {offsets = [31, 0], sizes = [1, 8], strides = [1, 1]} : vector<32x8xf32> to vector<1x8xf32>
    %225 = vector.broadcast %223 : vector<8x1xf32> to vector<8x8xf32>
    %226 = vector.broadcast %224 : vector<1x8xf32> to vector<8x8xf32>
    %227 = arith.mulf %225, %226 : vector<8x8xf32>
    %228 = arith.addf %222, %227 : vector<8x8xf32>
    %cst_12 = arith.constant dense<0xFF800000> : vector<8xf32>
    %229 = vector.multi_reduction <maximumf>, %228, %cst_12 [0] : vector<8x8xf32> to vector<8xf32>
    %230 = vector.shape_cast %229 : vector<8xf32> to vector<1x8xf32>
    %231 = vector.broadcast %230 : vector<1x8xf32> to vector<8x8xf32>
    %232 = arith.subf %228, %231 : vector<8x8xf32>
    %233 = math.exp %232 : vector<8x8xf32>
    %cst_13 = arith.constant dense<0.000000e+00> : vector<8xf32>
    %234 = vector.multi_reduction <add>, %233, %cst_13 [0] : vector<8x8xf32> to vector<8xf32>
    %235 = vector.shape_cast %234 : vector<8xf32> to vector<1x8xf32>
    %236 = math.log %235 : vector<1x8xf32>
    %237 = arith.addf %230, %236 : vector<1x8xf32>
    %238 = tpu.iota {dimensions = array<i32: 0>} : vector<8x8xi32>
    %239 = vector.broadcast %4 : vector<1x8xi32> to vector<8x8xi32>
    %240 = arith.cmpi eq, %238, %239 : vector<8x8xi32>
    %cst_14 = arith.constant 0.000000e+00 : f32
    %241 = vector.broadcast %cst_14 : f32 to vector<8x8xf32>
    %242 = arith.select %240, %228, %241 : vector<8x8xi1>, vector<8x8xf32>
    %cst_15 = arith.constant dense<0.000000e+00> : vector<8xf32>
    %243 = vector.multi_reduction <add>, %242, %cst_15 [0] : vector<8x8xf32> to vector<8xf32>
    %244 = vector.shape_cast %243 : vector<8xf32> to vector<1x8xf32>
    %c1_i32 = arith.constant 1 : i32
    %245 = arith.muli %arg0, %c1_i32 : i32
    %246 = arith.addi %245, %arg1 : i32
    %c8_i32 = arith.constant 8 : i32
    %247 = arith.muli %246, %c8_i32 : i32
    %248 = tpu.iota {dimensions = array<i32: 1>} : vector<1x8xi32>
    %249 = vector.broadcast %247 : i32 to vector<1x8xi32>
    %250 = arith.addi %249, %248 : vector<1x8xi32>
    %c8_i32_16 = arith.constant 8 : i32
    %251 = vector.broadcast %c8_i32_16 : i32 to vector<1x8xi32>
    %252 = arith.cmpi slt, %250, %251 : vector<1x8xi32>
    %253 = arith.subf %237, %244 : vector<1x8xf32>
    %cst_17 = arith.constant 0.000000e+00 : f32
    %254 = vector.broadcast %cst_17 : f32 to vector<1x8xf32>
    %255 = arith.select %252, %253, %254 : vector<1x8xi1>, vector<1x8xf32>
    %c0_18 = arith.constant 0 : index
    %c0_19 = arith.constant 0 : index
    %c0_20 = arith.constant 0 : index
    %256 = vector.load %arg8[%c0_18, %c0_19, %c0_20] : memref<1x1x8xf32, #tpu.memory_space<vmem>>, vector<1x1x8xf32>
    %257 = vector.shape_cast %255 : vector<1x8xf32> to vector<1x1x8xf32>
    %258 = arith.addf %256, %257 : vector<1x1x8xf32>
    %c0_21 = arith.constant 0 : index
    %c0_22 = arith.constant 0 : index
    %c0_23 = arith.constant 0 : index
    %259 = vector.load %arg8[%c0_21, %c0_22, %c0_23] : memref<1x1x8xf32, #tpu.memory_space<vmem>>, vector<1x1x8xf32>
    tpu.vector_store %arg8[%c0_21, %c0_22, %c0_23], %258 {strides = array<i32>} : memref<1x1x8xf32, #tpu.memory_space<vmem>>, vector<1x1x8xf32>,
    return
  }
  func.func @transform_0(%arg0: i32, %arg1: i32) -> (i32, i32) {
    %c1_i32 = arith.constant 1 : i32
    %0 = arith.muli %arg0, %c1_i32 : i32
    %1 = arith.addi %0, %arg1 : i32
    %c0_i32 = arith.constant 0 : i32
    %2 = arith.minsi %1, %c0_i32 : i32
    %c0_i32_0 = arith.constant 0 : i32
    %c0_i32_1 = arith.constant 0 : i32
    return %c0_i32_0, %2 : i32, i32
  }
  func.func @transform_1(%arg0: i32, %arg1: i32) -> (i32, i32) {
    %c1_i32 = arith.constant 1 : i32
    %0 = arith.muli %arg0, %c1_i32 : i32
    %1 = arith.addi %0, %arg1 : i32
    %c0_i32 = arith.constant 0 : i32
    %2 = arith.minsi %1, %c0_i32 : i32
    %c0_i32_0 = arith.constant 0 : i32
    %c0_i32_1 = arith.constant 0 : i32
    return %c0_i32_0, %2 : i32, i32
  }
  func.func @transform_2(%arg0: i32, %arg1: i32) -> (i32, i32) {
    %c0_i32 = arith.constant 0 : i32
    %c0_i32_0 = arith.constant 0 : i32
    %c0_i32_1 = arith.constant 0 : i32
    return %c0_i32, %c0_i32_0 : i32, i32
  }
  func.func @transform_3(%arg0: i32, %arg1: i32) -> (i32, i32) {
    %c0_i32 = arith.constant 0 : i32
    %c0_i32_0 = arith.constant 0 : i32
    %c0_i32_1 = arith.constant 0 : i32
    return %c0_i32, %c0_i32_0 : i32, i32
  }
  func.func @transform_4(%arg0: i32, %arg1: i32) -> (i32, i32) {
    %c0_i32 = arith.constant 0 : i32
    %c0_i32_0 = arith.constant 0 : i32
    %c0_i32_1 = arith.constant 0 : i32
    return %c0_i32, %c0_i32_0 : i32, i32
  }
  func.func @transform_5(%arg0: i32, %arg1: i32) -> (i32, i32) {
    %c0_i32 = arith.constant 0 : i32
    %c0_i32_0 = arith.constant 0 : i32
    %c0_i32_1 = arith.constant 0 : i32
    return %c0_i32, %c0_i32_0 : i32, i32
  }
  func.func @transform_6(%arg0: i32, %arg1: i32) -> (i32, i32, i32) {
    %c0_i32 = arith.constant 0 : i32
    %c0_i32_0 = arith.constant 0 : i32
    %c0_i32_1 = arith.constant 0 : i32
    return %arg0, %c0_i32, %c0_i32_0 : i32, i32, i32
  }
}

</mosaic_0001>

<llo_original>
// kernel: tpu_custom_call.1
$region0: #{tpu_custom_call.1}
  #allocation0 [shape = 'u32[]', space=smem, size = 0x4, offset = 0x4, fixed_abs, tag = 'smem constant byte address 0x4 - core index']
  #allocation1 [shape = 'u32[144,128]{1,0:T(1,128)}', space=vmem, size = 0x12000, scoped, tag = 'internal scratch']
  %s0 = inlined_call_operand.vmem [shape: f32[4,8], index: 0, kind: input, shape index: {}]
  %s1 = inlined_call_operand.vmem [shape: s32[1,8], index: 1, kind: input, shape index: {}]
  %s2 = inlined_call_operand.vmem [shape: f32[32,4], index: 2, kind: input, shape index: {}]
  %s3 = inlined_call_operand.vmem [shape: f32[32,1], index: 3, kind: input, shape index: {}]
  %s4 = inlined_call_operand.vmem [shape: f32[8,32], index: 4, kind: input, shape index: {}]
  %s5 = inlined_call_operand.vmem [shape: f32[8,1], index: 5, kind: input, shape index: {}]
  %s6 = inlined_call_operand.hbm [shape: f32[2,1,8], index: 6, kind: output, shape index: {}]
  %s7 = sld [smem:[#allocation0]]
  $region61: #{tpu_custom_call.1} parent=0
    _
  %s9 = ssub.s32 1, %s7
  %s10 = scalar_select 0, %s9, %s7
  $region1: #{tpu_custom_call.1} parent=0
    #allocation2 [shape = 'u8[1024]{0}', space=vmem, size = 0x400, scoped, tag = 'output window, operand 0']
    #allocation3 [shape = 's32[2]{0}', space=sflag, size = 0x8, scoped, tag = 'scoped memory for tpu_custom_call.1']
    %11 = vsyncpa [#allocation3], 0
    %s12 = scalar_lea.sflag [#allocation3], 1
    %13 = vsyncpa %s12, 0
    loop: start=0, step=1, limit=4
    $region2: #{tpu_custom_call.1} parent=1 // loop_pre_header
      _
    $region3: #{tpu_custom_call.1} parent=1 // loop_header
      %s15 = sphi 0, %s19
      %p16 = scmp.ge.s32.totalorder %s15, 4
      %s22 = sphi 0, %s34
      %s23 = sphi 0, %s30
      %s24 = sphi 0, %s22
      %s25 = sphi 0, %s23
      %s26 = sphi 0, %s24
      %s27 = sphi 0, %s25
      %s43 = sphi 0, %s45
      %s46 = sphi 0, %s43
      %s47 = sphi 0, %s46
      %s63 = sphi 0, %s47
      %s75 = sphi 0, %s77
      %s78 = sphi 0, %s75
      %s79 = sphi 0, %s78
      %s95 = sphi 0, %s79
      %s99 = sphi 0, %s99
      %s101 = sphi 0, %s99
      %s102 = sphi 0, %s101
      %s116 = sphi 0, %s102
      %s120 = sphi 0, %s120
      %s122 = sphi 0, %s120
      %s123 = sphi 0, %s122
      %s137 = sphi 0, %s123
      %s141 = sphi 0, %s141
      %s143 = sphi 0, %s141
      %s144 = sphi 0, %s143
      %s158 = sphi 0, %s144
      %s162 = sphi 0, %s162
      %s164 = sphi 0, %s162
      %s165 = sphi 0, %s164
      %s179 = sphi 0, %s165
      %s185 = sphi 0, %s187
      %s188 = sphi 0, %s185
      %s189 = sphi 0, %s188
      %s205 = sphi 0, %s189
    $region4: #{tpu_custom_call.1} parent=1 // loop_header_branch
      %18 = sbr.rel (%p16) target = $region8
    $region5: #{tpu_custom_call.1} parent=1 // loop_body
      %s20 = ssub.s32 %s15, 1
      %s21 = ssub.s32 %s15, 2
      %s28 = sadd.s32 1, %s23
      %p29 = scmp.ge.s32.totalorder %s28, 1
      %s30 = scalar_select %p29, 0, %s28
      %s31 = sadd.s32 1, %s22
      %s32 = scalar_select %p29, %s31, %s22
      %p33 = scmp.ge.s32.totalorder %s32, 2
      %s34 = scalar_select %p33, 0, %s32
      %s35 = sadd.s32 %s22, %s23
      %p36 = scmp.lt.s32.totalorder %s35, 0
      %s37 = scalar_select %p36, %s35, 0
      %s38 = sadd.s32 %s34, %s30
      %p39 = scmp.lt.s32.totalorder %s38, 0
      %s40 = scalar_select %p39, %s38, 0
      %s41 = ssub.s32 %s37, %s40
      %p42 = scmp.eq.s32.totalorder %s41, 0
      %s44 = sadd.s32 %s43, 1
      %s45 = scalar_select %p42, %s43, %s44
      %p48 = pneg %p42
      %p49 = scmp.eq.s32.totalorder %s15, 1
      %p50 = por %p48, %p49
      %p51 = scmp.ne.s32.totalorder %s43, %s46
      %p52 = scmp.eq.s32.totalorder %s15, 0
      %p53 = por %p51, %p52
      %p54 = scmp.ne.s32.totalorder %s43, %s46
      %p55 = scmp.eq.s32.totalorder %s20, 1
      %p56 = por %p54, %p55
      %p57 = scmp.ne.s32.totalorder %s46, %s47
      %p58 = scmp.eq.s32.totalorder %s20, 0
      %p59 = por %p57, %p58
      %p60 = scmp.ne.s32.totalorder %s46, %s47
      %p61 = scmp.eq.s32.totalorder %s21, 1
      %p62 = por %p60, %p61
      %p64 = scmp.ne.s32.totalorder %s47, %s63
      %p65 = scmp.eq.s32.totalorder %s21, 0
      %p66 = por %p64, %p65
      %s67 = sadd.s32 %s22, %s23
      %p68 = scmp.lt.s32.totalorder %s67, 0
      %s69 = scalar_select %p68, %s67, 0
      %s70 = sadd.s32 %s34, %s30
      %p71 = scmp.lt.s32.totalorder %s70, 0
      %s72 = scalar_select %p71, %s70, 0
      %s73 = ssub.s32 %s69, %s72
      %p74 = scmp.eq.s32.totalorder %s73, 0
      %s76 = sadd.s32 %s75, 1
      %s77 = scalar_select %p74, %s75, %s76
      %p80 = pneg %p74
      %p81 = scmp.eq.s32.totalorder %s15, 1
      %p82 = por %p80, %p81
      %p83 = scmp.ne.s32.totalorder %s75, %s78
      %p84 = scmp.eq.s32.totalorder %s15, 0
      %p85 = por %p83, %p84
      %p86 = scmp.ne.s32.totalorder %s75, %s78
      %p87 = scmp.eq.s32.totalorder %s20, 1
      %p88 = por %p86, %p87
      %p89 = scmp.ne.s32.totalorder %s78, %s79
      %p90 = scmp.eq.s32.totalorder %s20, 0
      %p91 = por %p89, %p90
      %p92 = scmp.ne.s32.totalorder %s78, %s79
      %p93 = scmp.eq.s32.totalorder %s21, 1
      %p94 = por %p92, %p93
      %p96 = scmp.ne.s32.totalorder %s79, %s95
      %p97 = scmp.eq.s32.totalorder %s21, 0
      %p98 = por %p96, %p97
      %s100 = sadd.s32 %s99, 1
      %p103 = scmp.eq.s32.totalorder %s15, 1
      %p104 = scmp.ne.s32.totalorder %s99, %s101
      %p105 = scmp.eq.s32.totalorder %s15, 0
      %p106 = por %p104, %p105
      %p107 = scmp.ne.s32.totalorder %s99, %s101
      %p108 = scmp.eq.s32.totalorder %s20, 1
      %p109 = por %p107, %p108
      %p110 = scmp.ne.s32.totalorder %s101, %s102
      %p111 = scmp.eq.s32.totalorder %s20, 0
      %p112 = por %p110, %p111
      %p113 = scmp.ne.s32.totalorder %s101, %s102
      %p114 = scmp.eq.s32.totalorder %s21, 1
      %p115 = por %p113, %p114
      %p117 = scmp.ne.s32.totalorder %s102, %s116
      %p118 = scmp.eq.s32.totalorder %s21, 0
      %p119 = por %p117, %p118
      %s121 = sadd.s32 %s120, 1
      %p124 = scmp.eq.s32.totalorder %s15, 1
      %p125 = scmp.ne.s32.totalorder %s120, %s122
      %p126 = scmp.eq.s32.totalorder %s15, 0
      %p127 = por %p125, %p126
      %p128 = scmp.ne.s32.totalorder %s120, %s122
      %p129 = scmp.eq.s32.totalorder %s20, 1
      %p130 = por %p128, %p129
      %p131 = scmp.ne.s32.totalorder %s122, %s123
      %p132 = scmp.eq.s32.totalorder %s20, 0
      %p133 = por %p131, %p132
      %p134 = scmp.ne.s32.totalorder %s122, %s123
      %p135 = scmp.eq.s32.totalorder %s21, 1
      %p136 = por %p134, %p135
      %p138 = scmp.ne.s32.totalorder %s123, %s137
      %p139 = scmp.eq.s32.totalorder %s21, 0
      %p140 = por %p138, %p139
      %s142 = sadd.s32 %s141, 1
      %p145 = scmp.eq.s32.totalorder %s15, 1
      %p146 = scmp.ne.s32.totalorder %s141, %s143
      %p147 = scmp.eq.s32.totalorder %s15, 0
      %p148 = por %p146, %p147
      %p149 = scmp.ne.s32.totalorder %s141, %s143
      %p150 = scmp.eq.s32.totalorder %s20, 1
      %p151 = por %p149, %p150
      %p152 = scmp.ne.s32.totalorder %s143, %s144
      %p153 = scmp.eq.s32.totalorder %s20, 0
      %p154 = por %p152, %p153
      %p155 = scmp.ne.s32.totalorder %s143, %s144
      %p156 = scmp.eq.s32.totalorder %s21, 1
      %p157 = por %p155, %p156
      %p159 = scmp.ne.s32.totalorder %s144, %s158
      %p160 = scmp.eq.s32.totalorder %s21, 0
      %p161 = por %p159, %p160
      %s163 = sadd.s32 %s162, 1
      %p166 = scmp.eq.s32.totalorder %s15, 1
      %p167 = scmp.ne.s32.totalorder %s162, %s164
      %p168 = scmp.eq.s32.totalorder %s15, 0
      %p169 = por %p167, %p168
      %p170 = scmp.ne.s32.totalorder %s162, %s164
      %p171 = scmp.eq.s32.totalorder %s20, 1
      %p172 = por %p170, %p171
      %p173 = scmp.ne.s32.totalorder %s164, %s165
      %p174 = scmp.eq.s32.totalorder %s20, 0
      %p175 = por %p173, %p174
      %p176 = scmp.ne.s32.totalorder %s164, %s165
      %p177 = scmp.eq.s32.totalorder %s21, 1
      %p178 = por %p176, %p177
      %p180 = scmp.ne.s32.totalorder %s165, %s179
      %p181 = scmp.eq.s32.totalorder %s21, 0
      %p182 = por %p180, %p181
      %s183 = ssub.s32 %s22, %s34
      %p184 = scmp.eq.s32.totalorder %s183, 0
      %s186 = sadd.s32 %s185, 1
      %s187 = scalar_select %p184, %s185, %s186
      %p190 = pneg %p184
      %p191 = scmp.eq.s32.totalorder %s15, 1
      %p192 = por %p190, %p191
      %p193 = scmp.ne.s32.totalorder %s185, %s188
      %p194 = scmp.eq.s32.totalorder %s15, 0
      %p195 = por %p193, %p194
      %p196 = scmp.ne.s32.totalorder %s185, %s188
      %p197 = scmp.eq.s32.totalorder %s20, 1
      %p198 = por %p196, %p197
      %p199 = scmp.ne.s32.totalorder %s188, %s189
      %p200 = scmp.eq.s32.totalorder %s20, 0
      %p201 = por %p199, %p200
      %p202 = scmp.ne.s32.totalorder %s188, %s189
      %p203 = scmp.eq.s32.totalorder %s21, 1
      %p204 = por %p202, %p203
      %p206 = scmp.ne.s32.totalorder %s189, %s205
      %p207 = scmp.eq.s32.totalorder %s21, 0
      %p208 = por %p206, %p207
      %p209 = scmp.le.s32.totalorder 1, %s15
      %p210 = scmp.lt.s32.totalorder %s15, 3
      %p211 = pnand %p209, %p210
      %p212 = pneg %p211
      // Predicated region
      $region9: #{tpu_custom_call.1} parent=5 // pred_check
        _
      $region10: #{tpu_custom_call.1} parent=5 // pred_check_branch
        %214 = sbr.rel (%p211) target = $region12
      $region11: #{tpu_custom_call.1} parent=5 // pred_region
        %s215 = ssub.s32 %s15, 1
        // Predicated region
        $region13: #{tpu_custom_call.1} parent=11 // pred_check
          %p216 = pneg %p112
        $region14: #{tpu_custom_call.1} parent=11 // pred_check_branch
          %218 = sbr.rel (%p216) target = $region16
        $region15: #{tpu_custom_call.1} parent=11 // pred_region
          _
        $region16: #{tpu_custom_call.1} parent=11 // pred_fallthru
          _
        // Predicated region
        $region17: #{tpu_custom_call.1} parent=11 // pred_check
          %p219 = pneg %p133
        $region18: #{tpu_custom_call.1} parent=11 // pred_check_branch
          %221 = sbr.rel (%p219) target = $region20
        $region19: #{tpu_custom_call.1} parent=11 // pred_region
          _
        $region20: #{tpu_custom_call.1} parent=11 // pred_fallthru
          _
        // Predicated region
        $region21: #{tpu_custom_call.1} parent=11 // pred_check
          %p222 = pneg %p154
        $region22: #{tpu_custom_call.1} parent=11 // pred_check_branch
          %224 = sbr.rel (%p222) target = $region24
        $region23: #{tpu_custom_call.1} parent=11 // pred_region
          _
        $region24: #{tpu_custom_call.1} parent=11 // pred_fallthru
          _
        // Predicated region
        $region25: #{tpu_custom_call.1} parent=11 // pred_check
          %p225 = pneg %p175
        $region26: #{tpu_custom_call.1} parent=11 // pred_check_branch
          %227 = sbr.rel (%p225) target = $region28
        $region27: #{tpu_custom_call.1} parent=11 // pred_region
          _
        $region28: #{tpu_custom_call.1} parent=11 // pred_fallthru
          _
      $region12: #{tpu_custom_call.1} parent=5 // pred_fallthru
        _
      %p228 = scmp.lt.s32.totalorder %s15, 2
      // Predicated region
      $region29: #{tpu_custom_call.1} parent=5 // pred_check
        %p229 = pneg %p228
      $region30: #{tpu_custom_call.1} parent=5 // pred_check_branch
        %231 = sbr.rel (%p229) target = $region32
      $region31: #{tpu_custom_call.1} parent=5 // pred_region
        // Predicated region
        $region33: #{tpu_custom_call.1} parent=31 // pred_check
          %p232 = pneg %p53
        $region34: #{tpu_custom_call.1} parent=31 // pred_check_branch
          %234 = sbr.rel (%p232) target = $region36
        $region35: #{tpu_custom_call.1} parent=31 // pred_region
          %s235 = sadd.s32 %s22, %s23
          %p236 = scmp.lt.s32.totalorder %s235, 0
          %s237 = scalar_select %p236, %s235, 0
          %p238 = scmp.lt.s32.totalorder %s237, 0
          %s239 = scalar_select %p238, %s237, 0
          %s240 = smul.addr %s239, 4
          %s241 = scalar_lea.vmem %s0, %s240
          %s242 = sadd.s32 %s22, %s23
          %p243 = scmp.lt.s32.totalorder %s242, 0
          %s244 = scalar_select %p243, %s242, 0
        $region36: #{tpu_custom_call.1} parent=31 // pred_fallthru
          _
        // Predicated region
        $region37: #{tpu_custom_call.1} parent=31 // pred_check
          %p245 = pneg %p85
        $region38: #{tpu_custom_call.1} parent=31 // pred_check_branch
          %247 = sbr.rel (%p245) target = $region40
        $region39: #{tpu_custom_call.1} parent=31 // pred_region
          %s248 = sadd.s32 %s22, %s23
          %p249 = scmp.lt.s32.totalorder %s248, 0
          %s250 = scalar_select %p249, %s248, 0
          %p251 = scmp.lt.s32.totalorder %s250, 0
          %s252 = scalar_select %p251, %s250, 0
          %s253 = scalar_lea.vmem %s1, %s252
          %s254 = sadd.s32 %s22, %s23
          %p255 = scmp.lt.s32.totalorder %s254, 0
          %s256 = scalar_select %p255, %s254, 0
        $region40: #{tpu_custom_call.1} parent=31 // pred_fallthru
          _
      $region32: #{tpu_custom_call.1} parent=5 // pred_fallthru
        _
      %p257 = scmp.le.s32.totalorder 1, %s15
      %p258 = scmp.lt.s32.totalorder %s15, 3
      %p259 = pnand %p257, %p258
      %p260 = pneg %p259
      // Predicated region
      $region41: #{tpu_custom_call.1} parent=5 // pred_check
        _
      $region42: #{tpu_custom_call.1} parent=5 // pred_check_branch
        %262 = sbr.rel (%p259) target = $region44
      $region43: #{tpu_custom_call.1} parent=5 // pred_region
        %s263 = ssub.s32 %s15, 1
        %s264 = sadd.s32 %s24, %s25
        %p265 = scmp.lt.s32.totalorder %s264, 0
        %s266 = scalar_select %p265, %s264, 0
        %p267 = scmp.lt.s32.totalorder %s266, 0
        %s268 = scalar_select %p267, %s266, 0
        %s269 = smul.addr %s268, 4
        %s270 = scalar_lea.vmem %s0, %s269
        %p271 = pneg %p59
        %p272 = pneg %p56
        %s273 = sadd.s32 %s24, %s25
        %p274 = scmp.lt.s32.totalorder %s273, 0
        %s275 = scalar_select %p274, %s273, 0
        %p276 = scmp.lt.s32.totalorder %s275, 0
        %s277 = scalar_select %p276, %s275, 0
        %s278 = scalar_lea.vmem %s1, %s277
        %p279 = pneg %p91
        %p280 = pneg %p88
        %p281 = pneg %p112
        %p282 = pneg %p109
        %p283 = pneg %p133
        %p284 = pneg %p130
        %p285 = pneg %p154
        %p286 = pneg %p151
        %p287 = pneg %p175
        %p288 = pneg %p172
        %p289 = pneg %p201
        %p290 = pneg %p198
        %s291 = sand.u32 %s188, 1
        %s292 = scalar_lea.sflag [#allocation3], %s291
        %s293 = sand.u32 %s188, 1
        %s294 = scalar_lea.vmem [#allocation2], %s293
        %s295 = sadd.s32 %s24, %s25
        %p296 = scmp.lt.s32.totalorder %s295, 0
        %s297 = scalar_select %p296, %s295, 0
        %p298 = scmp.lt.s32.totalorder %s297, 0
        %s299 = scalar_select %p298, %s297, 0
        %s300 = smul.addr %s299, 4
        %s301 = scalar_lea.vmem %s0, %s300
        %s302 = sadd.s32 %s24, %s25
        %p303 = scmp.lt.s32.totalorder %s302, 0
        %s304 = scalar_select %p303, %s302, 0
        %s305 = sadd.s32 %s24, %s25
        %p306 = scmp.lt.s32.totalorder %s305, 0
        %s307 = scalar_select %p306, %s305, 0
        %p308 = scmp.lt.s32.totalorder %s307, 0
        %s309 = scalar_select %p308, %s307, 0
        %s310 = scalar_lea.vmem %s1, %s309
        %s311 = sadd.s32 %s24, %s25
        %p312 = scmp.lt.s32.totalorder %s311, 0
        %s313 = scalar_select %p312, %s311, 0
        %p314 = scmp.eq.s32.totalorder %s25, 0
        // Predicated region
        $region45: #{tpu_custom_call.1} parent=43 // pred_check
          %p315 = pneg %p314
        $region46: #{tpu_custom_call.1} parent=43 // pred_check_branch
          %317 = sbr.rel (%p315) target = $region48
        $region47: #{tpu_custom_call.1} parent=43 // pred_region
          %vm318 = vcmask 57344
          %319 = vst.msk [vmem:[%s294] sm:$0x1] %vm318, 0.0
        $region48: #{tpu_custom_call.1} parent=43 // pred_fallthru
          _
        %v320 = vld [vmem:[%s301] sm:$0xf]
        %v321 = vld [vmem:[%s310] sm:$0x1]
        %v322 = vld [vmem:[%s2] sm:$0xff]
        %v323 = vld [vmem:[%s2 + $0x8] sm:$0xff]
        %v324 = vld [vmem:[%s2 + $0x10] sm:$0xff]
        %v325 = vld [vmem:[%s2 + $0x18] sm:$0xff]
        %v326 = vld [vmem:[%s3] sm:$0xff]
        %v327 = vld [vmem:[%s3 + $0x8] sm:$0xff]
        %v328 = vld [vmem:[%s3 + $0x10] sm:$0xff]
        %v329 = vld [vmem:[%s3 + $0x18] sm:$0xff]
        %v330 = vld [vmem:[%s4] sm:$0xff]
        %v331 = vld [vmem:[%s5] sm:$0xff]
        %333 = vset.pattern.permute.xlu0 0
        %334 = vperm.xlu0 %333, %v322
        %v335 = vpop.permute.xlu0 %334
        %338 = vset.pattern.permute.xlu0 0
        %339 = vperm.xlu0 %338, %v323
        %v340 = vpop.permute.xlu0 %339
        %343 = vset.pattern.permute.xlu0 0
        %344 = vperm.xlu0 %343, %v324
        %v345 = vpop.permute.xlu0 %344
        %348 = vset.pattern.permute.xlu0 0
        %349 = vperm.xlu0 %348, %v325
        %v350 = vpop.permute.xlu0 %349
        %v352 = vlaneseq
        %v353 = vshrl.u32 %v352, 7
        %v354 = vsub.s32 0, %v353
        %v355 = vrot.slane %v320, %v354
        %v356 = vmul.f32 %v335, %v355
        %v357 = vmul.f32 %v340, %v355
        %v358 = vmul.f32 %v345, %v355
        %v359 = vmul.f32 %v350, %v355
        %361 = vset.pattern.permute.xlu0 0
        %362 = vperm.xlu0 %361, %v326
        %v363 = vpop.permute.xlu0 %362
        %366 = vset.pattern.permute.xlu0 0
        %367 = vperm.xlu0 %366, %v327
        %v368 = vpop.permute.xlu0 %367
        %371 = vset.pattern.permute.xlu0 0
        %372 = vperm.xlu0 %371, %v328
        %v373 = vpop.permute.xlu0 %372
        %376 = vset.pattern.permute.xlu0 0
        %377 = vperm.xlu0 %376, %v329
        %v378 = vpop.permute.xlu0 %377
        %v380 = vadd.f32 %v363, %v356
        %v381 = vadd.f32 %v368, %v357
        %v382 = vadd.f32 %v373, %v358
        %v383 = vadd.f32 %v378, %v359
        %384 = vset.pattern.permute.xlu0 1
        %385 = vperm.xlu0 %384, %v322
        %v386 = vpop.permute.xlu0 %385
        %388 = vset.pattern.permute.xlu0 1
        %389 = vperm.xlu0 %388, %v323
        %v390 = vpop.permute.xlu0 %389
        %392 = vset.pattern.permute.xlu0 1
        %393 = vperm.xlu0 %392, %v324
        %v394 = vpop.permute.xlu0 %393
        %396 = vset.pattern.permute.xlu0 1
        %397 = vperm.xlu0 %396, %v325
        %v398 = vpop.permute.xlu0 %397
        %v400 = vlaneseq
        %v401 = vshrl.u32 %v400, 7
        %v402 = vsub.s32 1, %v401
        %v403 = vrot.slane %v320, %v402
        %v404 = vmul.f32 %v386, %v403
        %v405 = vmul.f32 %v390, %v403
        %v406 = vmul.f32 %v394, %v403
        %v407 = vmul.f32 %v398, %v403
        %v408 = vadd.f32 %v380, %v404
        %v409 = vadd.f32 %v381, %v405
        %v410 = vadd.f32 %v382, %v406
        %v411 = vadd.f32 %v383, %v407
        %412 = vset.pattern.permute.xlu0 2
        %413 = vperm.xlu0 %412, %v322
        %v414 = vpop.permute.xlu0 %413
        %416 = vset.pattern.permute.xlu0 2
        %417 = vperm.xlu0 %416, %v323
        %v418 = vpop.permute.xlu0 %417
        %420 = vset.pattern.permute.xlu0 2
        %421 = vperm.xlu0 %420, %v324
        %v422 = vpop.permute.xlu0 %421
        %424 = vset.pattern.permute.xlu0 2
        %425 = vperm.xlu0 %424, %v325
        %v426 = vpop.permute.xlu0 %425
        %v428 = vlaneseq
        %v429 = vshrl.u32 %v428, 7
        %v430 = vsub.s32 2, %v429
        %v431 = vrot.slane %v320, %v430
        %v432 = vmul.f32 %v414, %v431
        %v433 = vmul.f32 %v418, %v431
        %v434 = vmul.f32 %v422, %v431
        %v435 = vmul.f32 %v426, %v431
        %v436 = vadd.f32 %v408, %v432
        %v437 = vadd.f32 %v409, %v433
        %v438 = vadd.f32 %v410, %v434
        %v439 = vadd.f32 %v411, %v435
        %440 = vset.pattern.permute.xlu0 3
        %441 = vperm.xlu0 %440, %v322
        %v442 = vpop.permute.xlu0 %441
        %444 = vset.pattern.permute.xlu0 3
        %445 = vperm.xlu0 %444, %v323
        %v446 = vpop.permute.xlu0 %445
        %448 = vset.pattern.permute.xlu0 3
        %449 = vperm.xlu0 %448, %v324
        %v450 = vpop.permute.xlu0 %449
        %452 = vset.pattern.permute.xlu0 3
        %453 = vperm.xlu0 %452, %v325
        %v454 = vpop.permute.xlu0 %453
        %v456 = vlaneseq
        %v457 = vshrl.u32 %v456, 7
        %v458 = vsub.s32 3, %v457
        %v459 = vrot.slane %v320, %v458
        %v460 = vmul.f32 %v442, %v459
        %v461 = vmul.f32 %v446, %v459
        %v462 = vmul.f32 %v450, %v459
        %v463 = vmul.f32 %v454, %v459
        %v464 = vadd.f32 %v436, %v460
        %v465 = vadd.f32 %v437, %v461
        %v466 = vadd.f32 %v438, %v462
        %v467 = vadd.f32 %v439, %v463
        %v468 = vmax.f32 %v464, 0.0
        %v469 = vmax.f32 %v465, 0.0
        %v470 = vmax.f32 %v466, 0.0
        %v471 = vmax.f32 %v467, 0.0
        %473 = vset.pattern.permute.xlu0 0
        %474 = vperm.xlu0 %473, %v330
        %v475 = vpop.permute.xlu0 %474
        %v477 = vlaneseq
        %v478 = vshrl.u32 %v477, 7
        %v479 = vsub.s32 0, %v478
        %v480 = vrot.slane %v468, %v479
        %v481 = vmul.f32 %v475, %v480
        %483 = vset.pattern.permute.xlu0 0
        %484 = vperm.xlu0 %483, %v331
        %v485 = vpop.permute.xlu0 %484
        %v487 = vadd.f32 %v485, %v481
        %488 = vset.pattern.permute.xlu0 1
        %489 = vperm.xlu0 %488, %v330
        %v490 = vpop.permute.xlu0 %489
        %v492 = vlaneseq
        %v493 = vshrl.u32 %v492, 7
        %v494 = vsub.s32 1, %v493
        %v495 = vrot.slane %v468, %v494
        %v496 = vmul.f32 %v490, %v495
        %v497 = vadd.f32 %v487, %v496
        %498 = vset.pattern.permute.xlu0 2
        %499 = vperm.xlu0 %498, %v330
        %v500 = vpop.permute.xlu0 %499
        %v502 = vlaneseq
        %v503 = vshrl.u32 %v502, 7
        %v504 = vsub.s32 2, %v503
        %v505 = vrot.slane %v468, %v504
        %v506 = vmul.f32 %v500, %v505
        %v507 = vadd.f32 %v497, %v506
        %508 = vset.pattern.permute.xlu0 3
        %509 = vperm.xlu0 %508, %v330
        %v510 = vpop.permute.xlu0 %509
        %v512 = vlaneseq
        %v513 = vshrl.u32 %v512, 7
        %v514 = vsub.s32 3, %v513
        %v515 = vrot.slane %v468, %v514
        %v516 = vmul.f32 %v510, %v515
        %v517 = vadd.f32 %v507, %v516
        %518 = vset.pattern.permute.xlu0 4
        %519 = vperm.xlu0 %518, %v330
        %v520 = vpop.permute.xlu0 %519
        %v522 = vlaneseq
        %v523 = vshrl.u32 %v522, 7
        %v524 = vsub.s32 4, %v523
        %v525 = vrot.slane %v468, %v524
        %v526 = vmul.f32 %v520, %v525
        %v527 = vadd.f32 %v517, %v526
        %528 = vset.pattern.permute.xlu0 5
        %529 = vperm.xlu0 %528, %v330
        %v530 = vpop.permute.xlu0 %529
        %v532 = vlaneseq
        %v533 = vshrl.u32 %v532, 7
        %v534 = vsub.s32 5, %v533
        %v535 = vrot.slane %v468, %v534
        %v536 = vmul.f32 %v530, %v535
        %v537 = vadd.f32 %v527, %v536
        %538 = vset.pattern.permute.xlu0 6
        %539 = vperm.xlu0 %538, %v330
        %v540 = vpop.permute.xlu0 %539
        %v542 = vlaneseq
        %v543 = vshrl.u32 %v542, 7
        %v544 = vsub.s32 6, %v543
        %v545 = vrot.slane %v468, %v544
        %v546 = vmul.f32 %v540, %v545
        %v547 = vadd.f32 %v537, %v546
        %548 = vset.pattern.permute.xlu0 7
        %549 = vperm.xlu0 %548, %v330
        %v550 = vpop.permute.xlu0 %549
        %v552 = vlaneseq
        %v553 = vshrl.u32 %v552, 7
        %v554 = vsub.s32 7, %v553
        %v555 = vrot.slane %v468, %v554
        %v556 = vmul.f32 %v550, %v555
        %v557 = vadd.f32 %v547, %v556
        %558 = vset.pattern.permute.xlu0 8
        %559 = vperm.xlu0 %558, %v330
        %v560 = vpop.permute.xlu0 %559
        %v562 = vlaneseq
        %v563 = vshrl.u32 %v562, 7
        %v564 = vsub.s32 0, %v563
        %v565 = vrot.slane %v469, %v564
        %v566 = vmul.f32 %v560, %v565
        %v567 = vadd.f32 %v557, %v566
        %568 = vset.pattern.permute.xlu0 9
        %569 = vperm.xlu0 %568, %v330
        %v570 = vpop.permute.xlu0 %569
        %v572 = vlaneseq
        %v573 = vshrl.u32 %v572, 7
        %v574 = vsub.s32 1, %v573
        %v575 = vrot.slane %v469, %v574
        %v576 = vmul.f32 %v570, %v575
        %v577 = vadd.f32 %v567, %v576
        %578 = vset.pattern.permute.xlu0 10
        %579 = vperm.xlu0 %578, %v330
        %v580 = vpop.permute.xlu0 %579
        %v582 = vlaneseq
        %v583 = vshrl.u32 %v582, 7
        %v584 = vsub.s32 2, %v583
        %v585 = vrot.slane %v469, %v584
        %v586 = vmul.f32 %v580, %v585
        %v587 = vadd.f32 %v577, %v586
        %588 = vset.pattern.permute.xlu0 11
        %589 = vperm.xlu0 %588, %v330
        %v590 = vpop.permute.xlu0 %589
        %v592 = vlaneseq
        %v593 = vshrl.u32 %v592, 7
        %v594 = vsub.s32 3, %v593
        %v595 = vrot.slane %v469, %v594
        %v596 = vmul.f32 %v590, %v595
        %v597 = vadd.f32 %v587, %v596
        %598 = vset.pattern.permute.xlu0 12
        %599 = vperm.xlu0 %598, %v330
        %v600 = vpop.permute.xlu0 %599
        %v602 = vlaneseq
        %v603 = vshrl.u32 %v602, 7
        %v604 = vsub.s32 4, %v603
        %v605 = vrot.slane %v469, %v604
        %v606 = vmul.f32 %v600, %v605
        %v607 = vadd.f32 %v597, %v606
        %608 = vset.pattern.permute.xlu0 13
        %609 = vperm.xlu0 %608, %v330
        %v610 = vpop.permute.xlu0 %609
        %v612 = vlaneseq
        %v613 = vshrl.u32 %v612, 7
        %v614 = vsub.s32 5, %v613
        %v615 = vrot.slane %v469, %v614
        %v616 = vmul.f32 %v610, %v615
        %v617 = vadd.f32 %v607, %v616
        %618 = vset.pattern.permute.xlu0 14
        %619 = vperm.xlu0 %618, %v330
        %v620 = vpop.permute.xlu0 %619
        %v622 = vlaneseq
        %v623 = vshrl.u32 %v622, 7
        %v624 = vsub.s32 6, %v623
        %v625 = vrot.slane %v469, %v624
        %v626 = vmul.f32 %v620, %v625
        %v627 = vadd.f32 %v617, %v626
        %628 = vset.pattern.permute.xlu0 15
        %629 = vperm.xlu0 %628, %v330
        %v630 = vpop.permute.xlu0 %629
        %v632 = vlaneseq
        %v633 = vshrl.u32 %v632, 7
        %v634 = vsub.s32 7, %v633
        %v635 = vrot.slane %v469, %v634
        %v636 = vmul.f32 %v630, %v635
        %v637 = vadd.f32 %v627, %v636
        %638 = vset.pattern.permute.xlu0 16
        %639 = vperm.xlu0 %638, %v330
        %v640 = vpop.permute.xlu0 %639
        %v642 = vlaneseq
        %v643 = vshrl.u32 %v642, 7
        %v644 = vsub.s32 0, %v643
        %v645 = vrot.slane %v470, %v644
        %v646 = vmul.f32 %v640, %v645
        %v647 = vadd.f32 %v637, %v646
        %648 = vset.pattern.permute.xlu0 17
        %649 = vperm.xlu0 %648, %v330
        %v650 = vpop.permute.xlu0 %649
        %v652 = vlaneseq
        %v653 = vshrl.u32 %v652, 7
        %v654 = vsub.s32 1, %v653
        %v655 = vrot.slane %v470, %v654
        %v656 = vmul.f32 %v650, %v655
        %v657 = vadd.f32 %v647, %v656
        %658 = vset.pattern.permute.xlu0 18
        %659 = vperm.xlu0 %658, %v330
        %v660 = vpop.permute.xlu0 %659
        %v662 = vlaneseq
        %v663 = vshrl.u32 %v662, 7
        %v664 = vsub.s32 2, %v663
        %v665 = vrot.slane %v470, %v664
        %v666 = vmul.f32 %v660, %v665
        %v667 = vadd.f32 %v657, %v666
        %668 = vset.pattern.permute.xlu0 19
        %669 = vperm.xlu0 %668, %v330
        %v670 = vpop.permute.xlu0 %669
        %v672 = vlaneseq
        %v673 = vshrl.u32 %v672, 7
        %v674 = vsub.s32 3, %v673
        %v675 = vrot.slane %v470, %v674
        %v676 = vmul.f32 %v670, %v675
        %v677 = vadd.f32 %v667, %v676
        %678 = vset.pattern.permute.xlu0 20
        %679 = vperm.xlu0 %678, %v330
        %v680 = vpop.permute.xlu0 %679
        %v682 = vlaneseq
        %v683 = vshrl.u32 %v682, 7
        %v684 = vsub.s32 4, %v683
        %v685 = vrot.slane %v470, %v684
        %v686 = vmul.f32 %v680, %v685
        %v687 = vadd.f32 %v677, %v686
        %688 = vset.pattern.permute.xlu0 21
        %689 = vperm.xlu0 %688, %v330
        %v690 = vpop.permute.xlu0 %689
        %v692 = vlaneseq
        %v693 = vshrl.u32 %v692, 7
        %v694 = vsub.s32 5, %v693
        %v695 = vrot.slane %v470, %v694
        %v696 = vmul.f32 %v690, %v695
        %v697 = vadd.f32 %v687, %v696
        %698 = vset.pattern.permute.xlu0 22
        %699 = vperm.xlu0 %698, %v330
        %v700 = vpop.permute.xlu0 %699
        %v702 = vlaneseq
        %v703 = vshrl.u32 %v702, 7
        %v704 = vsub.s32 6, %v703
        %v705 = vrot.slane %v470, %v704
        %v706 = vmul.f32 %v700, %v705
        %v707 = vadd.f32 %v697, %v706
        %708 = vset.pattern.permute.xlu0 23
        %709 = vperm.xlu0 %708, %v330
        %v710 = vpop.permute.xlu0 %709
        %v712 = vlaneseq
        %v713 = vshrl.u32 %v712, 7
        %v714 = vsub.s32 7, %v713
        %v715 = vrot.slane %v470, %v714
        %v716 = vmul.f32 %v710, %v715
        %v717 = vadd.f32 %v707, %v716
        %718 = vset.pattern.permute.xlu0 24
        %719 = vperm.xlu0 %718, %v330
        %v720 = vpop.permute.xlu0 %719
        %v722 = vlaneseq
        %v723 = vshrl.u32 %v722, 7
        %v724 = vsub.s32 0, %v723
        %v725 = vrot.slane %v471, %v724
        %v726 = vmul.f32 %v720, %v725
        %v727 = vadd.f32 %v717, %v726
        %728 = vset.pattern.permute.xlu0 25
        %729 = vperm.xlu0 %728, %v330
        %v730 = vpop.permute.xlu0 %729
        %v732 = vlaneseq
        %v733 = vshrl.u32 %v732, 7
        %v734 = vsub.s32 1, %v733
        %v735 = vrot.slane %v471, %v734
        %v736 = vmul.f32 %v730, %v735
        %v737 = vadd.f32 %v727, %v736
        %738 = vset.pattern.permute.xlu0 26
        %739 = vperm.xlu0 %738, %v330
        %v740 = vpop.permute.xlu0 %739
        %v742 = vlaneseq
        %v743 = vshrl.u32 %v742, 7
        %v744 = vsub.s32 2, %v743
        %v745 = vrot.slane %v471, %v744
        %v746 = vmul.f32 %v740, %v745
        %v747 = vadd.f32 %v737, %v746
        %748 = vset.pattern.permute.xlu0 27
        %749 = vperm.xlu0 %748, %v330
        %v750 = vpop.permute.xlu0 %749
        %v752 = vlaneseq
        %v753 = vshrl.u32 %v752, 7
        %v754 = vsub.s32 3, %v753
        %v755 = vrot.slane %v471, %v754
        %v756 = vmul.f32 %v750, %v755
        %v757 = vadd.f32 %v747, %v756
        %758 = vset.pattern.permute.xlu0 28
        %759 = vperm.xlu0 %758, %v330
        %v760 = vpop.permute.xlu0 %759
        %v762 = vlaneseq
        %v763 = vshrl.u32 %v762, 7
        %v764 = vsub.s32 4, %v763
        %v765 = vrot.slane %v471, %v764
        %v766 = vmul.f32 %v760, %v765
        %v767 = vadd.f32 %v757, %v766
        %768 = vset.pattern.permute.xlu0 29
        %769 = vperm.xlu0 %768, %v330
        %v770 = vpop.permute.xlu0 %769
        %v772 = vlaneseq
        %v773 = vshrl.u32 %v772, 7
        %v774 = vsub.s32 5, %v773
        %v775 = vrot.slane %v471, %v774
        %v776 = vmul.f32 %v770, %v775
        %v777 = vadd.f32 %v767, %v776
        %778 = vset.pattern.permute.xlu0 30
        %779 = vperm.xlu0 %778, %v330
        %v780 = vpop.permute.xlu0 %779
        %v782 = vlaneseq
        %v783 = vshrl.u32 %v782, 7
        %v784 = vsub.s32 6, %v783
        %v785 = vrot.slane %v471, %v784
        %v786 = vmul.f32 %v780, %v785
        %v787 = vadd.f32 %v777, %v786
        %788 = vset.pattern.permute.xlu0 31
        %789 = vperm.xlu0 %788, %v330
        %v790 = vpop.permute.xlu0 %789
        %v792 = vlaneseq
        %v793 = vshrl.u32 %v792, 7
        %v794 = vsub.s32 7, %v793
        %v795 = vrot.slane %v471, %v794
        %v796 = vmul.f32 %v790, %v795
        %v797 = vadd.f32 %v787, %v796
        %vm798 = vcmask 64512
        %v799 = vsel %vm798, %v797, -inf
        %v800 = vrot.slane %v799, 4
        %v801 = vmax.f32 %v799, %v800
        %v802 = vrot.slane %v801, 2
        %v803 = vmax.f32 %v801, %v802
        %v804 = vrot.slane %v803, 1
        %v805 = vmax.f32 %v803, %v804
        %v806 = vsub.f32 %v797, %v805
        %v807 = vmul.f32 %v806, 1.442695
        %v808 = vpow.pop %v807
        %v809 = vsel %vm798, %v808, 0.0
        %v810 = vrot.slane %v809, 4
        %v811 = vadd.f32 %v809, %v810
        %v812 = vrot.slane %v811, 2
        %v813 = vadd.f32 %v811, %v812
        %v814 = vrot.slane %v813, 1
        %v815 = vadd.f32 %v813, %v814
        %v816 = vlog2.pop %v815
        %v817 = vmul.f32 %v816, 0.6931472
        %v818 = vadd.f32 %v805, %v817
        %v819 = vlaneseq
        %v820 = vshrl.u32 %v819, 7
        %v821 = vlaneseq
        %v822 = vshrl.u32 %v821, 7
        %v823 = vsub.s32 0, %v822
        %v824 = vrot.slane %v321, %v823
        %vm825 = vcmp.eq.s32.totalorder %v820, %v824
        %v826 = vsel %vm825, %v797, 0.0
        %v827 = vsel %vm798, %v826, 0.0
        %v828 = vrot.slane %v827, 4
        %v829 = vadd.f32 %v827, %v828
        %v830 = vrot.slane %v829, 2
        %v831 = vadd.f32 %v829, %v830
        %v832 = vrot.slane %v831, 1
        %v833 = vadd.f32 %v831, %v832
        %s834 = sadd.s32 %s24, %s25
        %s835 = smul.u32 %s834, 8
        %v836 = vlaneseq
        %v837 = vand.u32 %v836, 127
        %v838 = vstv %s835
        %v839 = vadd.s32 %v838, %v837
        %vm840 = vcmp.lt.s32.totalorder %v839, 8
        %v841 = vsub.f32 %v818, %v833
        %v842 = vsel %vm840, %v841, 0.0
        %v843 = vld [vmem:[%s294] sm:$0x1]
        %v844 = vadd.f32 %v843, %v842
        %vm845 = vcmask 57344
        %846 = vst.msk [vmem:[%s294] sm:$0x1] %vm845, %v844
        %s847 = sand.u32 %s188, 1
        %s848 = scalar_lea.sflag [#allocation3], %s847
        %s849 = sand.u32 %s188, 1
        %s850 = scalar_lea.vmem [#allocation2], %s849
        // Predicated region
        $region49: #{tpu_custom_call.1} parent=43 // pred_check
          %p851 = pneg %p198
        $region50: #{tpu_custom_call.1} parent=43 // pred_check_branch
          %853 = sbr.rel (%p851) target = $region52
        $region51: #{tpu_custom_call.1} parent=43 // pred_region
          %s855 = ssub.s32 16, 16
          %856 = vsyncadd %s848, %s855
          %s857 = smul.addr %s24, 16
          %s858 = scalar_lea.hbm %s6, %s857
          %s860 = sshll.u32 %s850, 4
          %s861 = int_to_ptr.vmem [resolvable:$true] %s860
          %863 = dma.vmem_to_hbm [thread:$0]  %s861, 16, %s858, %s848
        $region52: #{tpu_custom_call.1} parent=43 // pred_fallthru
          _
      $region44: #{tpu_custom_call.1} parent=5 // pred_fallthru
        _
      %p864 = scmp.le.s32.totalorder 2, %s15
      // Predicated region
      $region53: #{tpu_custom_call.1} parent=5 // pred_check
        %p865 = pneg %p864
      $region54: #{tpu_custom_call.1} parent=5 // pred_check_branch
        %867 = sbr.rel (%p865) target = $region56
      $region55: #{tpu_custom_call.1} parent=5 // pred_region
        %s868 = ssub.s32 %s15, 2
        // Predicated region
        $region57: #{tpu_custom_call.1} parent=55 // pred_check
          %p869 = pneg %p204
        $region58: #{tpu_custom_call.1} parent=55 // pred_check_branch
          %871 = sbr.rel (%p869) target = $region60
        $region59: #{tpu_custom_call.1} parent=55 // pred_region
          %s872 = sand.u32 %s189, 1
          %s873 = scalar_lea.sflag [#allocation3], %s872
          %s874 = sand.u32 %s189, 1
          %s875 = scalar_lea.vmem [#allocation2], %s874
          %876 = dma.done %s873, 16
        $region60: #{tpu_custom_call.1} parent=55 // pred_fallthru
          _
      $region56: #{tpu_custom_call.1} parent=5 // pred_fallthru
        _
    $region6: #{tpu_custom_call.1} parent=1 // loop_footer
      %s19 = sadd.s32 1, %s15
    $region7: #{tpu_custom_call.1} parent=1 // loop_footer_branch
      %14 = sbr.rel target = $region3
    $region8: #{tpu_custom_call.1} parent=1 // loop_exit
      _
    %877 = vsyncpa [#allocation3], 1
    %s878 = scalar_lea.sflag [#allocation3], 1
    %879 = vsyncpa %s878, 1

</llo_original>
